<compile_context>
chip_gen: v5e
topology: v5e:2x2
jax: 0.10.0
libtpu: 0.0.40
codegen_flags: <defaults>
</compile_context>

<pallas_src>
import math

import jax
import jax.numpy as jnp
from jax.experimental import pallas as pl
from jax.experimental.pallas import tpu as pltpu

EMBEDDING_DIM = 512
HALF_DIM = EMBEDDING_DIM // 2
_LOG_TIMESCALE = math.log(10000.0) / (HALF_DIM - 1)


def _sinusoid_add_kernel(mem_ref, out_ref):
    # mem_ref: (TN, 1, 512)   one "column" of mem rows
    # out_ref: (TN, TL, 512)  broadcast-add result tile
    tl = out_ref.shape[1]
    l0 = (pl.program_id(1) * tl).astype(jnp.float32)  # position offset of this L-tile

    # Build the (TL, 512) sinusoid slab for this L-tile on the fly.
    # Only HALF_DIM angles are materialized; sin/cos halves are concatenated
    # along lanes (256 | 256 -> 512, both multiples of 128 so layout-clean).
    pos = jax.lax.broadcasted_iota(jnp.int32, (tl, HALF_DIM), 0).astype(jnp.float32) + l0
    freq_idx = jax.lax.broadcasted_iota(jnp.int32, (tl, HALF_DIM), 1).astype(jnp.float32)
    inv_freq = jnp.exp(freq_idx * jnp.float32(-_LOG_TIMESCALE))
    angles = pos * inv_freq
    emb = jnp.concatenate([jnp.sin(angles), jnp.cos(angles)], axis=1)  # (TL, 512) f32

    out_ref[...] = emb[None, :, :] + mem_ref[...].astype(jnp.float32)


def _choose_tiles(n: int, mem_length: int) -> tuple:
    # Cap the L tile at 256 so the in-kernel slab rebuild stays a small
    # fraction of the stored elements (1/TN) once TN >= 8, while the output
    # tile targets ~4 MiB (double-buffered ~8 MiB -> fits every chip's
    # scoped-VMEM default) to amortize the ~600-cycle per-step overhead.
    tl = mem_length if mem_length <= 256 else 256
    per_row_bytes = tl * EMBEDDING_DIM * 4
    tn = max(1, min(n, (4 * 1024 * 1024) // per_row_bytes))
    return int(tn), int(tl)


def sinusoidal_positional_embedding(mem: jnp.ndarray, mem_length: int) -> jnp.ndarray:
    """Equivalent of SinusoidalPositionalEmbedding(mem_length).forward(mem)."""
    mem3 = mem.reshape(-1, 1, EMBEDDING_DIM)  # (N, 1, 512)
    n = mem3.shape[0]
    tn, tl = _choose_tiles(n, mem_length)

    return pl.pallas_call(
        _sinusoid_add_kernel,
        out_shape=jax.ShapeDtypeStruct((n, mem_length, EMBEDDING_DIM), jnp.float32),
        grid_spec=pltpu.PrefetchScalarGridSpec(
            num_scalar_prefetch=0,
            grid=(pl.cdiv(n, tn), pl.cdiv(mem_length, tl)),
            in_specs=[
                # TN mem rows per grid step; middle dim 1 equals the full dim.
                pl.BlockSpec((tn, 1, EMBEDDING_DIM), lambda i, j: (i, 0, 0)),
            ],
            out_specs=pl.BlockSpec((tn, tl, EMBEDDING_DIM), lambda i, j: (i, j, 0)),
        ),
        compiler_params=pltpu.CompilerParams(
            dimension_semantics=("parallel", "parallel"),
        ),
    )(mem3)


if __name__ == "__main__":
    mem_length = 8
    key = jax.random.PRNGKey(0)
    # Forward views the input as (-1, 1, 512); use (2, 2, 512) -> N = 4.
    mem = jax.random.normal(key, (2, 2, EMBEDDING_DIM), dtype=jnp.float32)

    out = sinusoidal_positional_embedding(mem, mem_length)
    out = jax.block_until_ready(out)

    # Pure-JAX reference (mirrors the torch __init__ + forward).
    inv_freq = jnp.exp(jnp.arange(HALF_DIM, dtype=jnp.float32) * -_LOG_TIMESCALE)
    angles = jnp.arange(mem_length, dtype=jnp.float32)[:, None] * inv_freq[None, :]
    emb_ref = jnp.concatenate([jnp.sin(angles), jnp.cos(angles)], axis=1)      # (L, 512)
    ref = emb_ref[None, :, :] + mem.reshape(-1, 1, EMBEDDING_DIM)              # (N, L, 512)

    assert out.shape == (4, mem_length, EMBEDDING_DIM)
    # Tolerance covers EUP vs XLA transcendental approximation differences.
    assert jnp.allclose(out, ref, atol=1e-4, rtol=1e-5), float(jnp.max(jnp.abs(out - ref)))

    print("KERNEL_OK")
</pallas_src>

<mosaic_0001>
module attributes {stable_mosaic.version = 11 : i64} {
  func.func @_sinusoid_add_kernel(%arg0: i32, %arg1: i32, %arg2: memref<4x1x512xf32, #tpu.memory_space<vmem>>, %arg3: memref<4x8x512xf32, #tpu.memory_space<vmem>>) attributes {dimension_semantics = [#tpu.dimension_semantics<parallel>, #tpu.dimension_semantics<parallel>], iteration_bounds = array<i64: 1, 1>, scalar_prefetch = 0 : i64, scratch_operands = 0 : i64, tpu.core_type = #tpu.core_type<tc>, window_params = [{transform_indices = @transform_0, window_bounds = array<i64: 4, 1, 512>}, {transform_indices = @transform_1, window_bounds = array<i64: 4, 8, 512>}]} {
    %c8_i32 = arith.constant 8 : i32
    %0 = arith.muli %arg1, %c8_i32 : i32
    %1 = arith.sitofp %0 : i32 to f32
    %2 = tpu.iota {dimensions = array<i32: 0>} : vector<8x256xi32>
    %3 = arith.sitofp %2 : vector<8x256xi32> to vector<8x256xf32>
    %4 = vector.broadcast %1 : f32 to vector<8x256xf32>
    %5 = arith.addf %3, %4 : vector<8x256xf32>
    %6 = tpu.iota {dimensions = array<i32: 1>} : vector<8x256xi32>
    %7 = arith.sitofp %6 : vector<8x256xi32> to vector<8x256xf32>
    %cst = arith.constant -0.0361189805 : f32
    %8 = vector.broadcast %cst : f32 to vector<8x256xf32>
    %9 = arith.mulf %7, %8 : vector<8x256xf32>
    %10 = math.exp %9 : vector<8x256xf32>
    %11 = arith.mulf %5, %10 : vector<8x256xf32>
    %12 = math.sin %11 : vector<8x256xf32>
    %13 = math.cos %11 : vector<8x256xf32>
    %14 = tpu.concatenate %12, %13 in 1 : vector<8x256xf32>, vector<8x256xf32> -> vector<8x512xf32>
    %15 = vector.shape_cast %14 : vector<8x512xf32> to vector<1x8x512xf32>
    %c0 = arith.constant 0 : index
    %c0_0 = arith.constant 0 : index
    %c0_1 = arith.constant 0 : index
    %16 = vector.load %arg2[%c0, %c0_0, %c0_1] : memref<4x1x512xf32, #tpu.memory_space<vmem>>, vector<4x1x512xf32>
    %17 = vector.broadcast %15 : vector<1x8x512xf32> to vector<4x8x512xf32>
    %18 = vector.broadcast %16 : vector<4x1x512xf32> to vector<4x8x512xf32>
    %19 = arith.addf %17, %18 : vector<4x8x512xf32>
    %c0_2 = arith.constant 0 : index
    %c0_3 = arith.constant 0 : index
    %c0_4 = arith.constant 0 : index
    %20 = vector.load %arg3[%c0_2, %c0_3, %c0_4] : memref<4x8x512xf32, #tpu.memory_space<vmem>>, vector<4x8x512xf32>
    tpu.vector_store %arg3[%c0_2, %c0_3, %c0_4], %19 {strides = array<i32>} : memref<4x8x512xf32, #tpu.memory_space<vmem>>, vector<4x8x512xf32>,
    return
  }
  func.func @transform_0(%arg0: i32, %arg1: i32) -> (i32, i32, i32) {
    %c0_i32 = arith.constant 0 : i32
    %c0_i32_0 = arith.constant 0 : i32
    %c0_i32_1 = arith.constant 0 : i32
    return %arg0, %c0_i32, %c0_i32_0 : i32, i32, i32
  }
  func.func @transform_1(%arg0: i32, %arg1: i32) -> (i32, i32, i32) {
    %c0_i32 = arith.constant 0 : i32
    %c0_i32_0 = arith.constant 0 : i32
    return %arg0, %arg1, %c0_i32 : i32, i32, i32
  }
}

</mosaic_0001>

<llo_original>
// kernel: tpu_custom_call.1
$region0: #{tpu_custom_call.1}
  #allocation0 [shape = 'u32[]', space=smem, size = 0x4, offset = 0x4, fixed_abs, tag = 'smem constant byte address 0x4 - core index']
  #allocation1 [shape = 'u32[72,128]{1,0:T(1,128)}', space=vmem, size = 0x9000, scoped, tag = 'internal scratch']
  %s0 = inlined_call_operand.hbm [shape: f32[4,1,512], index: 0, kind: input, shape index: {}]
  %s1 = inlined_call_operand.hbm [shape: f32[4,8,512], index: 1, kind: output, shape index: {}]
  %s2 = sld [smem:[#allocation0]]
  $region18: #{tpu_custom_call.1} parent=0
    _
  %s4 = ssub.s32 1, %s2
  %s5 = scalar_select 0, %s4, %s2
  $region1: #{tpu_custom_call.1} parent=0
    #allocation2 [shape = 'u8[8192]{0}', space=vmem, size = 0x2000, scoped, tag = 'input window, operand 0, single buffered']
    #allocation3 [shape = 's32[1]{0}', space=sflag, size = 0x4, scoped, tag = 'scoped memory for tpu_custom_call.1']
    #allocation4 [shape = 's32[1]{0}', space=sflag, size = 0x4, scoped, tag = 'scoped memory for tpu_custom_call.1']
    #allocation5 [shape = 'u8[65536]{0}', space=vmem, size = 0x10000, scoped, tag = 'output window, operand 0, single buffered']
    %6 = vsyncpa [#allocation3], 0
    %7 = vsyncpa [#allocation4], 0
    // Predicated region
    $region2: #{tpu_custom_call.1} parent=1 // pred_check
      _
    $region3: #{tpu_custom_call.1} parent=1 // pred_check_branch
      %9 = sbr.rel (0) target = $region5
    $region4: #{tpu_custom_call.1} parent=1 // pred_region
      %11 = vsyncadd [#allocation3], 0
      %s12 = sshll.u32 %s0, 4
      %s13 = int_to_ptr.hbm [resolvable:$true] %s12
      %s14 = sshll.u32 [#allocation2], 4
      %s15 = int_to_ptr.vmem [resolvable:$true] %s14
      %20 = dma.hbm_to_vmem [thread:$0]  %s13, 256, %s15, [#allocation3], 64, 64, 4
    $region5: #{tpu_custom_call.1} parent=1 // pred_fallthru
      _
    // Predicated region
    $region6: #{tpu_custom_call.1} parent=1 // pred_check
      _
    $region7: #{tpu_custom_call.1} parent=1 // pred_check_branch
      %22 = sbr.rel (0) target = $region9
    $region8: #{tpu_custom_call.1} parent=1 // pred_region
      %24 = dma.done [#allocation3], 256
    $region9: #{tpu_custom_call.1} parent=1 // pred_fallthru
      _
    %s25 = smul.u32 0, 8
    %s26 = scvt.s32.f32 %s25
    %v27 = vlaneseq
    %v28 = vshrl.u32 %v27, 7
    %v29 = vcvt.s32.f32 %v28
    %v30 = vstv %s26
    %v31 = vadd.f32 %v29, %v30
    %v32 = vlaneseq
    %v33 = vand.u32 %v32, 127
    %v34 = vadd.s32 %v33, 128
    %v35 = vcvt.s32.f32 %v33
    %v36 = vcvt.s32.f32 %v34
    %v37 = vmul.f32 %v35, -0.03611898
    %v38 = vmul.f32 %v36, -0.03611898
    %v39 = vmul.f32 %v37, 1.442695
    %v40 = vpow.pop %v39
    %v41 = vmul.f32 %v38, 1.442695
    %v42 = vpow.pop %v41
    %v43 = vmul.f32 %v31, %v40
    %v44 = vmul.f32 %v31, %v42
    %v45 = vand.u32 2147483647, %v43
    %vm46 = vcmp.le.f32.partialorder %v45, 0.7853982
    %vm47 = vcmp.lt.s32.totalorder %v43, 0
    %v48 = vand.u32 %v43, 2139095040
    %v49 = vshrl.u32 %v48, 23
    %v50 = vsub.s32 %v49, 127
    %v51 = vand.u32 2147483647, %v43
    %v52 = vand.u32 %v51, 8388607
    %v53 = vor.u32 %v52, 8388608
    %v54 = vsub.s32 0, %v53
    %v55 = vadd.s32 %v50, 1
    %vm56 = vcmp.gt.s32.totalorder %v55, 0
    %v57 = vsel %vm56, %v55, 0
    %v58 = vshrl.u32 %v57, 5
    %v59 = vand.u32 %v57, 31
    %v60 = vsub.s32 32, %v59
    %v61 = vshrl.u32 683565275, %v60
    %v62 = vshll.u32 683565275, %v59
    %v63 = vshrl.u32 2475754826, %v60
    %v64 = vor.u32 %v62, %v63
    %v65 = vshll.u32 2475754826, %v59
    %v66 = vshrl.u32 2131351028, %v60
    %v67 = vor.u32 %v65, %v66
    %v68 = vshll.u32 2131351028, %v59
    %v69 = vshrl.u32 2102212464, %v60
    %v70 = vor.u32 %v68, %v69
    %v71 = vshll.u32 2102212464, %v59
    %v72 = vshrl.u32 920167782, %v60
    %v73 = vor.u32 %v71, %v72
    %v74 = vshll.u32 920167782, %v59
    %v75 = vshrl.u32 1326507024, %v60
    %v76 = vor.u32 %v74, %v75
    %vm77 = vcmp.lt.s32.totalorder %v58, 1
    %vm78 = vcmp.lt.s32.totalorder %v58, 2
    %vm79 = vcmp.lt.s32.totalorder %v58, 3
    %vm80 = vcmp.lt.s32.totalorder %v58, 4
    %v81 = vsel %vm77, %v61, %v64
    %v82 = vsel %vm80, %v70, 2102212464
    %v83 = vsel %vm79, %v67, %v82
    %v84 = vsel %vm78, %v81, %v83
    %v85 = vsel %vm77, %v64, %v67
    %v86 = vsel %vm80, %v73, 920167782
    %v87 = vsel %vm79, %v70, %v86
    %v88 = vsel %vm78, %v85, %v87
    %v89 = vsel %vm77, %v67, %v70
    %v90 = vsel %vm80, %v76, 1326507024
    %v91 = vsel %vm79, %v73, %v90
    %v92 = vsel %vm78, %v89, %v91
    %v93 = vshll.u32 %v53, 8
    %v94 = vand.u32 %v93, 65535
    %v95 = vshrl.u32 %v93, 16
    %v96 = vand.u32 %v92, 65535
    %v97 = vshrl.u32 %v92, 16
    %v98 = vmul.u32 %v94, %v96
    %v99 = vmul.u32 %v94, %v97
    %v100 = vmul.u32 %v95, %v96
    %v101 = vmul.u32 %v95, %v97
    %v102 = vshll.u32 %v99, 16
    %v103 = vshrl.u32 %v99, 16
    %v104 = vshll.u32 %v100, 16
    %v105 = vshrl.u32 %v100, 16
    %vm106 = vc.u32 %v98, %v102
    %v107 = vsel %vm106, 1, 0
    %v108 = vadd.s32 %v98, %v102
    %v109 = vadd.s32 %v101, %v107
    %vm110 = vc.u32 %v108, %v104
    %v111 = vsel %vm110, 1, 0
    %v112 = vadd.s32 %v108, %v104
    %v113 = vadd.s32 %v109, %v111
    %v114 = vadd.s32 %v113, %v103
    %v115 = vadd.s32 %v114, %v105
    %v116 = vand.u32 %v93, 65535
    %v117 = vshrl.u32 %v93, 16
    %v118 = vand.u32 %v88, 65535
    %v119 = vshrl.u32 %v88, 16
    %v120 = vmul.u32 %v116, %v118
    %v121 = vmul.u32 %v116, %v119
    %v122 = vmul.u32 %v117, %v118
    %v123 = vmul.u32 %v117, %v119
    %v124 = vshll.u32 %v121, 16
    %v125 = vshrl.u32 %v121, 16
    %v126 = vshll.u32 %v122, 16
    %v127 = vshrl.u32 %v122, 16
    %vm128 = vc.u32 %v120, %v124
    %v129 = vsel %vm128, 1, 0
    %v130 = vadd.s32 %v120, %v124
    %v131 = vadd.s32 %v123, %v129
    %vm132 = vc.u32 %v130, %v126
    %v133 = vsel %vm132, 1, 0
    %v134 = vadd.s32 %v130, %v126
    %v135 = vadd.s32 %v131, %v133
    %v136 = vadd.s32 %v135, %v125
    %v137 = vadd.s32 %v136, %v127
    %v138 = vmul.u32 %v93, %v84
    %v139 = vadd.s32 %v115, %v134
    %vm140 = vc.u32 %v115, %v134
    %v141 = vadd.s32 %v137, 1
    %v142 = vsel %vm140, %v141, %v137
    %v143 = vadd.s32 %v138, %v142
    %v144 = vadd.s32 %v143, 536870912
    %v145 = vshrl.u32 %v144, 30
    %v146 = vshll.u32 %v145, 30
    %v147 = vsub.s32 %v143, %v146
    %vm148 = vcmp.lt.s32.totalorder %v147, 0
    %v149 = vsub.s32 0, %v147
    %v150 = vsel %vm148, %v149, %v147
    %v151 = vclz %v150
    %v152 = vsub.s32 %v151, 2
    %vm153 = vcmp.gt.s32.totalorder 0, %v152
    %v154 = vsel %vm153, 0, %v152
    %v155 = vsub.s32 32, %v154
    %v156 = vshll.u32 %v147, %v154
    %v157 = vshrl.u32 %v139, %v155
    %v158 = vor.u32 %v156, %v157
    %v159 = vsub.s32 4294967266, %v154
    %v160 = vadd.s32 %v159, 127
    %v161 = vshll.u32 %v160, 23
    %v162 = vor.u32 4788187, %v161
    %v163 = vand.u32 2147483647, %v162
    %v165 = vcvt.s32.f32 %v158
    %v166 = vmul.f32 %v165, %v163
    %v167 = vxor.u32 %v166, 2147483648
    %v168 = vsel %vm47, %v167, %v166
    %v169 = vsub.s32 4, %v145
    %v170 = vsel %vm47, %v169, %v145
    %v171 = vsel %vm46, %v43, %v168
    %v172 = vsel %vm46, 0, %v170
    %v173 = vmul.f32 %v171, %v171
    %v174 = vmul.f32 %v173, -0.001358992
    %v175 = vadd.f32 %v174, 0.041655596
    %v176 = vmul.f32 %v173, %v175
    %v177 = vadd.f32 %v176, -0.4999988
    %v178 = vmul.f32 %v173, %v177
    %v179 = vadd.f32 1.0, %v178
    %v180 = vmul.f32 %v171, %v171
    %v181 = vmul.f32 %v180, -0.00019511016
    %v182 = vadd.f32 %v181, 0.008332121
    %v183 = vmul.f32 %v180, %v182
    %v184 = vadd.f32 %v183, -0.16666654
    %v185 = vmul.f32 %v180, %v184
    %v186 = vadd.f32 %v185, 1.0
    %v187 = vmul.f32 %v186, %v171
    %vm188 = vweird.f32 %v43
    %v189 = vadd.s32 %v172, 3
    %v190 = vand.u32 %v189, 3
    %vm191 = vcmp.lt.s32.totalorder %v190, 2
    %vm192 = vcmp.eq.s32.totalorder %v190, 0
    %v193 = vxor.u32 %v187, 2147483648
    %v194 = vsel %vm192, %v179, %v193
    %vm195 = vcmp.eq.s32.totalorder %v190, 2
    %v196 = vxor.u32 %v179, 2147483648
    %v197 = vsel %vm195, %v196, %v187
    %v198 = vsel %vm191, %v194, %v197
    %v199 = vsel %vm188, nan, %v198
    %v200 = vand.u32 2147483647, %v44
    %vm201 = vcmp.le.f32.partialorder %v200, 0.7853982
    %vm202 = vcmp.lt.s32.totalorder %v44, 0
    %v203 = vand.u32 %v44, 2139095040
    %v204 = vshrl.u32 %v203, 23
    %v205 = vsub.s32 %v204, 127
    %v206 = vand.u32 2147483647, %v44
    %v207 = vand.u32 %v206, 8388607
    %v208 = vor.u32 %v207, 8388608
    %v209 = vsub.s32 0, %v208
    %v210 = vadd.s32 %v205, 1
    %vm211 = vcmp.gt.s32.totalorder %v210, 0
    %v212 = vsel %vm211, %v210, 0
    %v213 = vshrl.u32 %v212, 5
    %v214 = vand.u32 %v212, 31
    %v215 = vsub.s32 32, %v214
    %v216 = vshrl.u32 683565275, %v215
    %v217 = vshll.u32 683565275, %v214
    %v218 = vshrl.u32 2475754826, %v215
    %v219 = vor.u32 %v217, %v218
    %v220 = vshll.u32 2475754826, %v214
    %v221 = vshrl.u32 2131351028, %v215
    %v222 = vor.u32 %v220, %v221
    %v223 = vshll.u32 2131351028, %v214
    %v224 = vshrl.u32 2102212464, %v215
    %v225 = vor.u32 %v223, %v224
    %v226 = vshll.u32 2102212464, %v214
    %v227 = vshrl.u32 920167782, %v215
    %v228 = vor.u32 %v226, %v227
    %v229 = vshll.u32 920167782, %v214
    %v230 = vshrl.u32 1326507024, %v215
    %v231 = vor.u32 %v229, %v230
    %vm232 = vcmp.lt.s32.totalorder %v213, 1
    %vm233 = vcmp.lt.s32.totalorder %v213, 2
    %vm234 = vcmp.lt.s32.totalorder %v213, 3
    %vm235 = vcmp.lt.s32.totalorder %v213, 4
    %v236 = vsel %vm232, %v216, %v219
    %v237 = vsel %vm235, %v225, 2102212464
    %v238 = vsel %vm234, %v222, %v237
    %v239 = vsel %vm233, %v236, %v238
    %v240 = vsel %vm232, %v219, %v222
    %v241 = vsel %vm235, %v228, 920167782
    %v242 = vsel %vm234, %v225, %v241
    %v243 = vsel %vm233, %v240, %v242
    %v244 = vsel %vm232, %v222, %v225
    %v245 = vsel %vm235, %v231, 1326507024
    %v246 = vsel %vm234, %v228, %v245
    %v247 = vsel %vm233, %v244, %v246
    %v248 = vshll.u32 %v208, 8
    %v249 = vand.u32 %v248, 65535
    %v250 = vshrl.u32 %v248, 16
    %v251 = vand.u32 %v247, 65535
    %v252 = vshrl.u32 %v247, 16
    %v253 = vmul.u32 %v249, %v251
    %v254 = vmul.u32 %v249, %v252
    %v255 = vmul.u32 %v250, %v251
    %v256 = vmul.u32 %v250, %v252
    %v257 = vshll.u32 %v254, 16
    %v258 = vshrl.u32 %v254, 16
    %v259 = vshll.u32 %v255, 16
    %v260 = vshrl.u32 %v255, 16
    %vm261 = vc.u32 %v253, %v257
    %v262 = vsel %vm261, 1, 0
    %v263 = vadd.s32 %v253, %v257
    %v264 = vadd.s32 %v256, %v262
    %vm265 = vc.u32 %v263, %v259
    %v266 = vsel %vm265, 1, 0
    %v267 = vadd.s32 %v263, %v259
    %v268 = vadd.s32 %v264, %v266
    %v269 = vadd.s32 %v268, %v258
    %v270 = vadd.s32 %v269, %v260
    %v271 = vand.u32 %v248, 65535
    %v272 = vshrl.u32 %v248, 16
    %v273 = vand.u32 %v243, 65535
    %v274 = vshrl.u32 %v243, 16
    %v275 = vmul.u32 %v271, %v273
    %v276 = vmul.u32 %v271, %v274
    %v277 = vmul.u32 %v272, %v273
    %v278 = vmul.u32 %v272, %v274
    %v279 = vshll.u32 %v276, 16
    %v280 = vshrl.u32 %v276, 16
    %v281 = vshll.u32 %v277, 16
    %v282 = vshrl.u32 %v277, 16
    %vm283 = vc.u32 %v275, %v279
    %v284 = vsel %vm283, 1, 0
    %v285 = vadd.s32 %v275, %v279
    %v286 = vadd.s32 %v278, %v284
    %vm287 = vc.u32 %v285, %v281
    %v288 = vsel %vm287, 1, 0
    %v289 = vadd.s32 %v285, %v281
    %v290 = vadd.s32 %v286, %v288
    %v291 = vadd.s32 %v290, %v280
    %v292 = vadd.s32 %v291, %v282
    %v293 = vmul.u32 %v248, %v239
    %v294 = vadd.s32 %v270, %v289
    %vm295 = vc.u32 %v270, %v289
    %v296 = vadd.s32 %v292, 1
    %v297 = vsel %vm295, %v296, %v292
    %v298 = vadd.s32 %v293, %v297
    %v299 = vadd.s32 %v298, 536870912
    %v300 = vshrl.u32 %v299, 30
    %v301 = vshll.u32 %v300, 30
    %v302 = vsub.s32 %v298, %v301
    %vm303 = vcmp.lt.s32.totalorder %v302, 0
    %v304 = vsub.s32 0, %v302
    %v305 = vsel %vm303, %v304, %v302
    %v306 = vclz %v305
    %v307 = vsub.s32 %v306, 2
    %vm308 = vcmp.gt.s32.totalorder 0, %v307
    %v309 = vsel %vm308, 0, %v307
    %v310 = vsub.s32 32, %v309
    %v311 = vshll.u32 %v302, %v309
    %v312 = vshrl.u32 %v294, %v310
    %v313 = vor.u32 %v311, %v312
    %v314 = vsub.s32 4294967266, %v309
    %v315 = vadd.s32 %v314, 127
    %v316 = vshll.u32 %v315, 23
    %v317 = vor.u32 4788187, %v316
    %v318 = vand.u32 2147483647, %v317
    %v320 = vcvt.s32.f32 %v313
    %v321 = vmul.f32 %v320, %v318
    %v322 = vxor.u32 %v321, 2147483648
    %v323 = vsel %vm202, %v322, %v321
    %v324 = vsub.s32 4, %v300
    %v325 = vsel %vm202, %v324, %v300
    %v326 = vsel %vm201, %v44, %v323
    %v327 = vsel %vm201, 0, %v325
    %v328 = vmul.f32 %v326, %v326
    %v329 = vmul.f32 %v328, -0.001358992
    %v330 = vadd.f32 %v329, 0.041655596
    %v331 = vmul.f32 %v328, %v330
    %v332 = vadd.f32 %v331, -0.4999988
    %v333 = vmul.f32 %v328, %v332
    %v334 = vadd.f32 1.0, %v333
    %v335 = vmul.f32 %v326, %v326
    %v336 = vmul.f32 %v335, -0.00019511016
    %v337 = vadd.f32 %v336, 0.008332121
    %v338 = vmul.f32 %v335, %v337
    %v339 = vadd.f32 %v338, -0.16666654
    %v340 = vmul.f32 %v335, %v339
    %v341 = vadd.f32 %v340, 1.0
    %v342 = vmul.f32 %v341, %v326
    %vm343 = vweird.f32 %v44
    %v344 = vadd.s32 %v327, 3
    %v345 = vand.u32 %v344, 3
    %vm346 = vcmp.lt.s32.totalorder %v345, 2
    %vm347 = vcmp.eq.s32.totalorder %v345, 0
    %v348 = vxor.u32 %v342, 2147483648
    %v349 = vsel %vm347, %v334, %v348
    %vm350 = vcmp.eq.s32.totalorder %v345, 2
    %v351 = vxor.u32 %v334, 2147483648
    %v352 = vsel %vm350, %v351, %v342
    %v353 = vsel %vm346, %v349, %v352
    %v354 = vsel %vm343, nan, %v353
    %v355 = vand.u32 2147483647, %v43
    %vm356 = vcmp.le.f32.partialorder %v355, 0.7853982
    %vm357 = vcmp.lt.s32.totalorder %v43, 0
    %v358 = vand.u32 %v43, 2139095040
    %v359 = vshrl.u32 %v358, 23
    %v360 = vsub.s32 %v359, 127
    %v361 = vand.u32 2147483647, %v43
    %v362 = vand.u32 %v361, 8388607
    %v363 = vor.u32 %v362, 8388608
    %v364 = vsub.s32 0, %v363
    %v365 = vadd.s32 %v360, 1
    %vm366 = vcmp.gt.s32.totalorder %v365, 0
    %v367 = vsel %vm366, %v365, 0
    %v368 = vshrl.u32 %v367, 5
    %v369 = vand.u32 %v367, 31
    %v370 = vsub.s32 32, %v369
    %v371 = vshrl.u32 683565275, %v370
    %v372 = vshll.u32 683565275, %v369
    %v373 = vshrl.u32 2475754826, %v370
    %v374 = vor.u32 %v372, %v373
    %v375 = vshll.u32 2475754826, %v369
    %v376 = vshrl.u32 2131351028, %v370
    %v377 = vor.u32 %v375, %v376
    %v378 = vshll.u32 2131351028, %v369
    %v379 = vshrl.u32 2102212464, %v370
    %v380 = vor.u32 %v378, %v379
    %v381 = vshll.u32 2102212464, %v369
    %v382 = vshrl.u32 920167782, %v370
    %v383 = vor.u32 %v381, %v382
    %v384 = vshll.u32 920167782, %v369
    %v385 = vshrl.u32 1326507024, %v370
    %v386 = vor.u32 %v384, %v385
    %vm387 = vcmp.lt.s32.totalorder %v368, 1
    %vm388 = vcmp.lt.s32.totalorder %v368, 2
    %vm389 = vcmp.lt.s32.totalorder %v368, 3
    %vm390 = vcmp.lt.s32.totalorder %v368, 4
    %v391 = vsel %vm387, %v371, %v374
    %v392 = vsel %vm390, %v380, 2102212464
    %v393 = vsel %vm389, %v377, %v392
    %v394 = vsel %vm388, %v391, %v393
    %v395 = vsel %vm387, %v374, %v377
    %v396 = vsel %vm390, %v383, 920167782
    %v397 = vsel %vm389, %v380, %v396
    %v398 = vsel %vm388, %v395, %v397
    %v399 = vsel %vm387, %v377, %v380
    %v400 = vsel %vm390, %v386, 1326507024
    %v401 = vsel %vm389, %v383, %v400
    %v402 = vsel %vm388, %v399, %v401
    %v403 = vshll.u32 %v363, 8
    %v404 = vand.u32 %v403, 65535
    %v405 = vshrl.u32 %v403, 16
    %v406 = vand.u32 %v402, 65535
    %v407 = vshrl.u32 %v402, 16
    %v408 = vmul.u32 %v404, %v406
    %v409 = vmul.u32 %v404, %v407
    %v410 = vmul.u32 %v405, %v406
    %v411 = vmul.u32 %v405, %v407
    %v412 = vshll.u32 %v409, 16
    %v413 = vshrl.u32 %v409, 16
    %v414 = vshll.u32 %v410, 16
    %v415 = vshrl.u32 %v410, 16
    %vm416 = vc.u32 %v408, %v412
    %v417 = vsel %vm416, 1, 0
    %v418 = vadd.s32 %v408, %v412
    %v419 = vadd.s32 %v411, %v417
    %vm420 = vc.u32 %v418, %v414
    %v421 = vsel %vm420, 1, 0
    %v422 = vadd.s32 %v418, %v414
    %v423 = vadd.s32 %v419, %v421
    %v424 = vadd.s32 %v423, %v413
    %v425 = vadd.s32 %v424, %v415
    %v426 = vand.u32 %v403, 65535
    %v427 = vshrl.u32 %v403, 16
    %v428 = vand.u32 %v398, 65535
    %v429 = vshrl.u32 %v398, 16
    %v430 = vmul.u32 %v426, %v428
    %v431 = vmul.u32 %v426, %v429
    %v432 = vmul.u32 %v427, %v428
    %v433 = vmul.u32 %v427, %v429
    %v434 = vshll.u32 %v431, 16
    %v435 = vshrl.u32 %v431, 16
    %v436 = vshll.u32 %v432, 16
    %v437 = vshrl.u32 %v432, 16
    %vm438 = vc.u32 %v430, %v434
    %v439 = vsel %vm438, 1, 0
    %v440 = vadd.s32 %v430, %v434
    %v441 = vadd.s32 %v433, %v439
    %vm442 = vc.u32 %v440, %v436
    %v443 = vsel %vm442, 1, 0
    %v444 = vadd.s32 %v440, %v436
    %v445 = vadd.s32 %v441, %v443
    %v446 = vadd.s32 %v445, %v435
    %v447 = vadd.s32 %v446, %v437
    %v448 = vmul.u32 %v403, %v394
    %v449 = vadd.s32 %v425, %v444
    %vm450 = vc.u32 %v425, %v444
    %v451 = vadd.s32 %v447, 1
    %v452 = vsel %vm450, %v451, %v447
    %v453 = vadd.s32 %v448, %v452
    %v454 = vadd.s32 %v453, 536870912
    %v455 = vshrl.u32 %v454, 30
    %v456 = vshll.u32 %v455, 30
    %v457 = vsub.s32 %v453, %v456
    %vm458 = vcmp.lt.s32.totalorder %v457, 0
    %v459 = vsub.s32 0, %v457
    %v460 = vsel %vm458, %v459, %v457
    %v461 = vclz %v460
    %v462 = vsub.s32 %v461, 2
    %vm463 = vcmp.gt.s32.totalorder 0, %v462
    %v464 = vsel %vm463, 0, %v462
    %v465 = vsub.s32 32, %v464
    %v466 = vshll.u32 %v457, %v464
    %v467 = vshrl.u32 %v449, %v465
    %v468 = vor.u32 %v466, %v467
    %v469 = vsub.s32 4294967266, %v464
    %v470 = vadd.s32 %v469, 127
    %v471 = vshll.u32 %v470, 23
    %v472 = vor.u32 4788187, %v471
    %v473 = vand.u32 2147483647, %v472
    %v475 = vcvt.s32.f32 %v468
    %v476 = vmul.f32 %v475, %v473
    %v477 = vxor.u32 %v476, 2147483648
    %v478 = vsel %vm357, %v477, %v476
    %v479 = vsub.s32 4, %v455
    %v480 = vsel %vm357, %v479, %v455
    %v481 = vsel %vm356, %v43, %v478
    %v482 = vsel %vm356, 0, %v480
    %v483 = vmul.f32 %v481, %v481
    %v484 = vmul.f32 %v483, -0.001358992
    %v485 = vadd.f32 %v484, 0.041655596
    %v486 = vmul.f32 %v483, %v485
    %v487 = vadd.f32 %v486, -0.4999988
    %v488 = vmul.f32 %v483, %v487
    %v489 = vadd.f32 1.0, %v488
    %v490 = vmul.f32 %v481, %v481
    %v491 = vmul.f32 %v490, -0.00019511016
    %v492 = vadd.f32 %v491, 0.008332121
    %v493 = vmul.f32 %v490, %v492
    %v494 = vadd.f32 %v493, -0.16666654
    %v495 = vmul.f32 %v490, %v494
    %v496 = vadd.f32 %v495, 1.0
    %v497 = vmul.f32 %v496, %v481
    %vm498 = vweird.f32 %v43
    %v499 = vand.u32 %v482, 3
    %vm500 = vcmp.lt.s32.totalorder %v499, 2
    %vm501 = vcmp.eq.s32.totalorder %v499, 0
    %v502 = vxor.u32 %v497, 2147483648
    %v503 = vsel %vm501, %v489, %v502
    %vm504 = vcmp.eq.s32.totalorder %v499, 2
    %v505 = vxor.u32 %v489, 2147483648
    %v506 = vsel %vm504, %v505, %v497
    %v507 = vsel %vm500, %v503, %v506
    %v508 = vsel %vm498, nan, %v507
    %v509 = vand.u32 2147483647, %v44
    %vm510 = vcmp.le.f32.partialorder %v509, 0.7853982
    %vm511 = vcmp.lt.s32.totalorder %v44, 0
    %v512 = vand.u32 %v44, 2139095040
    %v513 = vshrl.u32 %v512, 23
    %v514 = vsub.s32 %v513, 127
    %v515 = vand.u32 2147483647, %v44
    %v516 = vand.u32 %v515, 8388607
    %v517 = vor.u32 %v516, 8388608
    %v518 = vsub.s32 0, %v517
    %v519 = vadd.s32 %v514, 1
    %vm520 = vcmp.gt.s32.totalorder %v519, 0
    %v521 = vsel %vm520, %v519, 0
    %v522 = vshrl.u32 %v521, 5
    %v523 = vand.u32 %v521, 31
    %v524 = vsub.s32 32, %v523
    %v525 = vshrl.u32 683565275, %v524
    %v526 = vshll.u32 683565275, %v523
    %v527 = vshrl.u32 2475754826, %v524
    %v528 = vor.u32 %v526, %v527
    %v529 = vshll.u32 2475754826, %v523
    %v530 = vshrl.u32 2131351028, %v524
    %v531 = vor.u32 %v529, %v530
    %v532 = vshll.u32 2131351028, %v523
    %v533 = vshrl.u32 2102212464, %v524
    %v534 = vor.u32 %v532, %v533
    %v535 = vshll.u32 2102212464, %v523
    %v536 = vshrl.u32 920167782, %v524
    %v537 = vor.u32 %v535, %v536
    %v538 = vshll.u32 920167782, %v523
    %v539 = vshrl.u32 1326507024, %v524
    %v540 = vor.u32 %v538, %v539
    %vm541 = vcmp.lt.s32.totalorder %v522, 1
    %vm542 = vcmp.lt.s32.totalorder %v522, 2
    %vm543 = vcmp.lt.s32.totalorder %v522, 3
    %vm544 = vcmp.lt.s32.totalorder %v522, 4
    %v545 = vsel %vm541, %v525, %v528
    %v546 = vsel %vm544, %v534, 2102212464
    %v547 = vsel %vm543, %v531, %v546
    %v548 = vsel %vm542, %v545, %v547
    %v549 = vsel %vm541, %v528, %v531
    %v550 = vsel %vm544, %v537, 920167782
    %v551 = vsel %vm543, %v534, %v550
    %v552 = vsel %vm542, %v549, %v551
    %v553 = vsel %vm541, %v531, %v534
    %v554 = vsel %vm544, %v540, 1326507024
    %v555 = vsel %vm543, %v537, %v554
    %v556 = vsel %vm542, %v553, %v555
    %v557 = vshll.u32 %v517, 8
    %v558 = vand.u32 %v557, 65535
    %v559 = vshrl.u32 %v557, 16
    %v560 = vand.u32 %v556, 65535
    %v561 = vshrl.u32 %v556, 16
    %v562 = vmul.u32 %v558, %v560
    %v563 = vmul.u32 %v558, %v561
    %v564 = vmul.u32 %v559, %v560
    %v565 = vmul.u32 %v559, %v561
    %v566 = vshll.u32 %v563, 16
    %v567 = vshrl.u32 %v563, 16
    %v568 = vshll.u32 %v564, 16
    %v569 = vshrl.u32 %v564, 16
    %vm570 = vc.u32 %v562, %v566
    %v571 = vsel %vm570, 1, 0
    %v572 = vadd.s32 %v562, %v566
    %v573 = vadd.s32 %v565, %v571
    %vm574 = vc.u32 %v572, %v568
    %v575 = vsel %vm574, 1, 0
    %v576 = vadd.s32 %v572, %v568
    %v577 = vadd.s32 %v573, %v575
    %v578 = vadd.s32 %v577, %v567
    %v579 = vadd.s32 %v578, %v569
    %v580 = vand.u32 %v557, 65535
    %v581 = vshrl.u32 %v557, 16
    %v582 = vand.u32 %v552, 65535
    %v583 = vshrl.u32 %v552, 16
    %v584 = vmul.u32 %v580, %v582
    %v585 = vmul.u32 %v580, %v583
    %v586 = vmul.u32 %v581, %v582
    %v587 = vmul.u32 %v581, %v583
    %v588 = vshll.u32 %v585, 16
    %v589 = vshrl.u32 %v585, 16
    %v590 = vshll.u32 %v586, 16
    %v591 = vshrl.u32 %v586, 16
    %vm592 = vc.u32 %v584, %v588
    %v593 = vsel %vm592, 1, 0
    %v594 = vadd.s32 %v584, %v588
    %v595 = vadd.s32 %v587, %v593
    %vm596 = vc.u32 %v594, %v590
    %v597 = vsel %vm596, 1, 0
    %v598 = vadd.s32 %v594, %v590
    %v599 = vadd.s32 %v595, %v597
    %v600 = vadd.s32 %v599, %v589
    %v601 = vadd.s32 %v600, %v591
    %v602 = vmul.u32 %v557, %v548
    %v603 = vadd.s32 %v579, %v598
    %vm604 = vc.u32 %v579, %v598
    %v605 = vadd.s32 %v601, 1
    %v606 = vsel %vm604, %v605, %v601
    %v607 = vadd.s32 %v602, %v606
    %v608 = vadd.s32 %v607, 536870912
    %v609 = vshrl.u32 %v608, 30
    %v610 = vshll.u32 %v609, 30
    %v611 = vsub.s32 %v607, %v610
    %vm612 = vcmp.lt.s32.totalorder %v611, 0
    %v613 = vsub.s32 0, %v611
    %v614 = vsel %vm612, %v613, %v611
    %v615 = vclz %v614
    %v616 = vsub.s32 %v615, 2
    %vm617 = vcmp.gt.s32.totalorder 0, %v616
    %v618 = vsel %vm617, 0, %v616
    %v619 = vsub.s32 32, %v618
    %v620 = vshll.u32 %v611, %v618
    %v621 = vshrl.u32 %v603, %v619
    %v622 = vor.u32 %v620, %v621
    %v623 = vsub.s32 4294967266, %v618
    %v624 = vadd.s32 %v623, 127
    %v625 = vshll.u32 %v624, 23
    %v626 = vor.u32 4788187, %v625
    %v627 = vand.u32 2147483647, %v626
    %v629 = vcvt.s32.f32 %v622
    %v630 = vmul.f32 %v629, %v627
    %v631 = vxor.u32 %v630, 2147483648
    %v632 = vsel %vm511, %v631, %v630
    %v633 = vsub.s32 4, %v609
    %v634 = vsel %vm511, %v633, %v609
    %v635 = vsel %vm510, %v44, %v632
    %v636 = vsel %vm510, 0, %v634
    %v637 = vmul.f32 %v635, %v635
    %v638 = vmul.f32 %v637, -0.001358992
    %v639 = vadd.f32 %v638, 0.041655596
    %v640 = vmul.f32 %v637, %v639
    %v641 = vadd.f32 %v640, -0.4999988
    %v642 = vmul.f32 %v637, %v641
    %v643 = vadd.f32 1.0, %v642
    %v644 = vmul.f32 %v635, %v635
    %v645 = vmul.f32 %v644, -0.00019511016
    %v646 = vadd.f32 %v645, 0.008332121
    %v647 = vmul.f32 %v644, %v646
    %v648 = vadd.f32 %v647, -0.16666654
    %v649 = vmul.f32 %v644, %v648
    %v650 = vadd.f32 %v649, 1.0
    %v651 = vmul.f32 %v650, %v635
    %vm652 = vweird.f32 %v44
    %v653 = vand.u32 %v636, 3
    %vm654 = vcmp.lt.s32.totalorder %v653, 2
    %vm655 = vcmp.eq.s32.totalorder %v653, 0
    %v656 = vxor.u32 %v651, 2147483648
    %v657 = vsel %vm655, %v643, %v656
    %vm658 = vcmp.eq.s32.totalorder %v653, 2
    %v659 = vxor.u32 %v643, 2147483648
    %v660 = vsel %vm658, %v659, %v651
    %v661 = vsel %vm654, %v657, %v660
    %v662 = vsel %vm652, nan, %v661
    %v663 = vld [vmem:[#allocation2] sm:$0xf]
    %v664 = vld [vmem:[#allocation2 + $0x4] sm:$0xf]
    %v665 = vld [vmem:[#allocation2 + $0x8] sm:$0xf]
    %v666 = vld [vmem:[#allocation2 + $0xc] sm:$0xf]
    %v671 = vperm.slane %v663, 0
    %v672 = vperm.slane %v663, 1
    %v673 = vperm.slane %v663, 2
    %v674 = vperm.slane %v663, 3
    %v675 = vperm.slane %v664, 0
    %v676 = vperm.slane %v664, 1
    %v677 = vperm.slane %v664, 2
    %v678 = vperm.slane %v664, 3
    %v679 = vperm.slane %v665, 0
    %v680 = vperm.slane %v665, 1
    %v681 = vperm.slane %v665, 2
    %v682 = vperm.slane %v665, 3
    %v683 = vperm.slane %v666, 0
    %v684 = vperm.slane %v666, 1
    %v685 = vperm.slane %v666, 2
    %v686 = vperm.slane %v666, 3
    %v703 = vadd.f32 %v199, %v671
    %v704 = vadd.f32 %v354, %v672
    %v705 = vadd.f32 %v508, %v673
    %v706 = vadd.f32 %v662, %v674
    %v707 = vadd.f32 %v199, %v675
    %v708 = vadd.f32 %v354, %v676
    %v709 = vadd.f32 %v508, %v677
    %v710 = vadd.f32 %v662, %v678
    %v711 = vadd.f32 %v199, %v679
    %v712 = vadd.f32 %v354, %v680
    %v713 = vadd.f32 %v508, %v681
    %v714 = vadd.f32 %v662, %v682
    %v715 = vadd.f32 %v199, %v683
    %v716 = vadd.f32 %v354, %v684
    %v717 = vadd.f32 %v508, %v685
    %v718 = vadd.f32 %v662, %v686
    %719 = vst [vmem:[#allocation5] sm:$0xff] %v703
    %720 = vst [vmem:[#allocation5 + $0x8] sm:$0xff] %v704
    %721 = vst [vmem:[#allocation5 + $0x10] sm:$0xff] %v705
    %722 = vst [vmem:[#allocation5 + $0x18] sm:$0xff] %v706
    %723 = vst [vmem:[#allocation5 + $0x20] sm:$0xff] %v707
    %724 = vst [vmem:[#allocation5 + $0x28] sm:$0xff] %v708
    %725 = vst [vmem:[#allocation5 + $0x30] sm:$0xff] %v709
    %726 = vst [vmem:[#allocation5 + $0x38] sm:$0xff] %v710
    %727 = vst [vmem:[#allocation5 + $0x40] sm:$0xff] %v711
    %728 = vst [vmem:[#allocation5 + $0x48] sm:$0xff] %v712
    %729 = vst [vmem:[#allocation5 + $0x50] sm:$0xff] %v713
    %730 = vst [vmem:[#allocation5 + $0x58] sm:$0xff] %v714
    %731 = vst [vmem:[#allocation5 + $0x60] sm:$0xff] %v715
    %732 = vst [vmem:[#allocation5 + $0x68] sm:$0xff] %v716
    %733 = vst [vmem:[#allocation5 + $0x70] sm:$0xff] %v717
    %734 = vst [vmem:[#allocation5 + $0x78] sm:$0xff] %v718
    // Predicated region
    $region10: #{tpu_custom_call.1} parent=1 // pred_check
      _
    $region11: #{tpu_custom_call.1} parent=1 // pred_check_branch
      %736 = sbr.rel (0) target = $region13
    $region12: #{tpu_custom_call.1} parent=1 // pred_region
      %738 = vsyncadd [#allocation4], 0
      %s739 = sshll.u32 [#allocation5], 4
      %s740 = int_to_ptr.vmem [resolvable:$true] %s739
      %s741 = sshll.u32 %s1, 4
      %s742 = int_to_ptr.hbm [resolvable:$true] %s741
      %747 = dma.vmem_to_hbm [thread:$0]  %s740, 2048, %s742, [#allocation4], 512, 512, 32
    $region13: #{tpu_custom_call.1} parent=1 // pred_fallthru
      _
    // Predicated region
    $region14: #{tpu_custom_call.1} parent=1 // pred_check
      _
    $region15: #{tpu_custom_call.1} parent=1 // pred_check_branch
      %749 = sbr.rel (0) target = $region17
    $region16: #{tpu_custom_call.1} parent=1 // pred_region
      %751 = dma.done [#allocation4], 2048
    $region17: #{tpu_custom_call.1} parent=1 // pred_fallthru
      _
    %752 = vsyncpa [#allocation3], 1
    %753 = vsyncpa [#allocation4], 1

</llo_original>
